<compile_context>
chip_gen: v7x
topology: tpu7x:2x2x1
jax: 0.10.0
libtpu: 0.0.40
codegen_flags: <defaults>
</compile_context>

<pallas_src>
import functools
from typing import NamedTuple

import jax
import jax.numpy as jnp
from jax.experimental import pallas as pl
from jax.experimental.pallas import tpu as pltpu


# --------------------------------------------------------------------------- #
# Helpers
# --------------------------------------------------------------------------- #
def _round_up(x, m):
    return (x + m - 1) // m * m


def _sublane_multiple(dtype):
    """Rows per vreg sublane group: 8 for 32-bit, 16 for 16-bit, 32 for 8-bit."""
    itemsize = jnp.dtype(dtype).itemsize
    if itemsize >= 4:
        return 8
    if itemsize == 2:
        return 16
    return 32


def _tpu_vmem_budget():
    """Return (per-core VMEM budget bytes, #TensorCores heuristic)."""
    cap = None
    try:
        info = pltpu.get_tpu_info()
        cap = getattr(info, "vmem_capacity_bytes", None)
    except Exception:
        cap = None
    if not cap:
        cap = 64 << 20                       # conservative: assume v7x-sized VMEM
    cap = int(cap)
    # Leave ~16 MiB for compiler-internal scratch; never budget above ~100 MiB.
    budget = max(min(cap - (16 << 20), 100 << 20), 24 << 20)
    # v7x has 64 MiB/TC and 2 TCs; 128 MiB chips (v5e/v6e) are single-TC.
    ncores = 2 if cap <= (80 << 20) else 1
    return budget, ncores


def _largest_dividing_tk(hid_p, target):
    """Largest multiple of 128 that divides hid_p and is <= target."""
    blocks = hid_p // 128
    t = max(1, min(target // 128, blocks))
    for d in range(t, 0, -1):
        if blocks % d == 0:
            return 128 * d
    return 128


def _footprint(tm, tk, dim_p, isz, osz, wsz, weights_resident):
    """Approximate VMEM bytes for one grid step (incl. double buffering)."""
    wbuf = 1 if weights_resident else 2
    return (2 * tm * dim_p * isz            # x tile (double-buffered)
            + 2 * tm * dim_p * osz          # out tile (double-buffered)
            + wbuf * 2 * dim_p * tk * wsz   # W1 + W2 slab(s)
            + wbuf * tk * 4 + dim_p * 4     # b1 slab(s) + b2 (f32)
            + tm * dim_p * 4                # f32 accumulator scratch
            + tm * tk * 4)                  # h intermediate (f32)


def _choose_tiles(n, dim_p, hid_p, isz, osz, wsz, sub, budget, ncores,
                  tm_req, tk_req):
    """Pick (tm, tk, num_k) that fit the VMEM budget."""
    reserve = 4 << 20
    n_sub = _round_up(max(int(n), 1), sub)

    tm_cands = [c for c in (2048, 1024, 768, 512, 384, 256, 128, 64, 32, 16, 8)
                if c % sub == 0 and c <= n_sub]
    if not tm_cands:
        tm_cands = [n_sub]
    tm_min = tm_cands[-1]

    def fits(tm, tk, nk):
        return _footprint(tm, tk, dim_p, isz, osz, wsz, nk == 1) + reserve <= budget

    # ---- K tiling: fully resident weights if they fit, else divisor slabs ---
    if tk_req is not None:
        tk = max(128, min(_round_up(int(tk_req), 128), hid_p))
        tk = _largest_dividing_tk(hid_p, tk)
    elif fits(tm_min, hid_p, 1):
        tk = hid_p                           # W1/W2 DMA'd exactly once
    else:
        tk_target = 1024 if budget >= (64 << 20) else 512
        tk = _largest_dividing_tk(hid_p, tk_target)
        while tk > 128 and not fits(tm_min, tk, hid_p // tk):
            tk = _largest_dividing_tk(hid_p, max(128, tk // 2))
    num_k = hid_p // tk

    # ---- row tile: largest candidate that fits -------------------------------
    if tm_req is not None:
        tm = max(sub, min(_round_up(int(tm_req), sub), n_sub))
    else:
        tm = tm_min
        for c in tm_cands:
            if fits(c, tk, num_k):
                tm = c
                break

    # ---- v7x: keep row-tile count a multiple of the TC count -----------------
    if ncores > 1 and n_sub >= ncores * sub:
        num_rows = -(-n_sub // tm)
        if num_rows % ncores != 0:
            tm2 = _round_up(-(-n_sub // _round_up(num_rows, ncores)), sub)
            tm = max(sub, min(tm2, tm))

    return tm, tk, num_k


# --------------------------------------------------------------------------- #
# Kernel
# --------------------------------------------------------------------------- #
def _ffn_kernel(x_ref, w1_ref, b1_ref, w2_ref, b2_ref, o_ref, acc_ref):
    """One (tm, dim_p) row tile x one (tk,) hidden slab per grid step."""
    k = pl.program_id(1)

    @pl.when(k == 0)
    def _():
        acc_ref[...] = jnp.zeros_like(acc_ref)

    # ffn_1 slab: (tm, dim_p) @ (dim_p, tk) -> (tm, tk); bias + ReLU in f32.
    h = jnp.dot(x_ref[...], w1_ref[...], preferred_element_type=jnp.float32)
    h = jnp.maximum(h + b1_ref[...], 0.0)

    # ffn_2 partial: accumulate (tm, tk) @ (tk, dim_p) into resident f32 acc.
    acc_ref[...] += jnp.dot(h.astype(w2_ref.dtype), w2_ref[...],
                            preferred_element_type=jnp.float32)

    @pl.when(k == pl.num_programs(1) - 1)
    def _():
        o_ref[...] = (acc_ref[...] + b2_ref[...]).astype(o_ref.dtype)


# --------------------------------------------------------------------------- #
# Parameter preparation (pad/cast once, off the hot path)
# --------------------------------------------------------------------------- #
class FFNParams(NamedTuple):
    w1: jax.Array    # (dim_p, hid_p)  compute dtype
    b1: jax.Array    # (1, hid_p)      f32
    w2: jax.Array    # (hid_p, dim_p)  compute dtype
    b2: jax.Array    # (1, dim_p)      f32
    dim: int
    hidden: int


def prepare_ffn_params(w1, b1, w2, b2, *, compute_dtype=None):
    """Pad feature dims to 128-multiples and cast weights once.

    Weights are (in, out) layout (transposed vs. torch.nn.Linear.weight).
    compute_dtype=None -> bfloat16 for f32 weights (MXU-native narrow type);
    pass jnp.float32 for exact f32 compute.
    """
    dim, hidden = w1.shape
    assert w2.shape == (hidden, dim)
    if compute_dtype is None:
        compute_dtype = jnp.bfloat16 if w1.dtype == jnp.float32 else w1.dtype
    dim_p = _round_up(dim, 128)
    hid_p = _round_up(hidden, 128)

    w1c = w1.astype(compute_dtype)
    w2c = w2.astype(compute_dtype)
    if (dim_p, hid_p) != (dim, hidden):
        w1c = jnp.pad(w1c, ((0, dim_p - dim), (0, hid_p - hidden)))
        w2c = jnp.pad(w2c, ((0, hid_p - hidden), (0, dim_p - dim)))
    b1p = jnp.pad(b1.astype(jnp.float32), (0, hid_p - hidden)).reshape(1, hid_p)
    b2p = jnp.pad(b2.astype(jnp.float32), (0, dim_p - dim)).reshape(1, dim_p)
    return FFNParams(w1c, b1p, w2c, b2p, int(dim), int(hidden))


# --------------------------------------------------------------------------- #
# Apply
# --------------------------------------------------------------------------- #
def _ffn_apply(x, params: FFNParams, *, tm=None, tk=None):
    """x: [..., dim] -> [..., dim] with pre-padded/cast params."""
    orig_shape = x.shape
    out_dtype = x.dtype
    dim, hidden = params.dim, params.hidden
    assert orig_shape[-1] == dim, "last dim of x must equal FFN dim"
    dim_p, hid_p = params.w1.shape
    compute_dtype = params.w1.dtype

    x2d = x.reshape(-1, dim).astype(compute_dtype)
    n = x2d.shape[0]

    isz = jnp.dtype(compute_dtype).itemsize
    wsz = isz
    osz = jnp.dtype(out_dtype).itemsize
    sub = max(_sublane_multiple(compute_dtype), _sublane_multiple(out_dtype))

    budget, ncores = _tpu_vmem_budget()
    tm, tk, num_k = _choose_tiles(n, dim_p, hid_p, isz, osz, wsz, sub,
                                  budget, ncores, tm, tk)

    n_pad = _round_up(max(n, 1), tm)
    num_rows = n_pad // tm

    if n_pad != n or dim_p != dim:
        x_p = jnp.pad(x2d, ((0, n_pad - n), (0, dim_p - dim)))
    else:
        x_p = x2d

    # ---- BlockSpecs ----------------------------------------------------------
    if num_k == 1:
        # Fully resident weights: constant block index, single buffer.
        resident = functools.partial(pl.BlockSpec, pipeline_mode=pl.Buffered(1))
        w1_spec = resident((dim_p, tk), lambda i, k: (0, 0))
        b1_spec = resident((1, tk), lambda i, k: (0, 0))
        w2_spec = resident((tk, dim_p), lambda i, k: (0, 0))
    else:
        # Serpentine K order: the slab at each row-tile boundary matches the
        # previous step's, so Pallas skips one full W1+W2 slab DMA per i switch.
        def _k(i, k):
            return k + (i % 2) * (num_k - 1 - 2 * k)
        w1_spec = pl.BlockSpec((dim_p, tk), lambda i, k: (0, _k(i, k)))
        b1_spec = pl.BlockSpec((1, tk), lambda i, k: (0, _k(i, k)))
        w2_spec = pl.BlockSpec((tk, dim_p), lambda i, k: (_k(i, k), 0))
    b2_spec = pl.BlockSpec((1, dim_p), lambda i, k: (0, 0),
                           pipeline_mode=pl.Buffered(1))

    in_specs = [
        pl.BlockSpec((tm, dim_p), lambda i, k: (i, 0)),   # x row tile
        w1_spec, b1_spec, w2_spec, b2_spec,
    ]
    out_spec = pl.BlockSpec((tm, dim_p), lambda i, k: (i, 0))

    # ---- cost estimate (actual padded traffic, incl. weight re-streaming) ----
    weight_bytes = 2 * dim_p * hid_p * wsz
    weight_passes = 1 if num_k == 1 else num_rows
    bytes_accessed = int(n_pad * dim_p * (isz + osz)
                         + weight_passes * weight_bytes
                         + weight_passes * (hid_p + dim_p) * 4)
    flops = int(4 * n_pad * dim_p * hid_p)

    out = pl.pallas_call(
        _ffn_kernel,
        out_shape=jax.ShapeDtypeStruct((n_pad, dim_p), out_dtype),
        grid_spec=pltpu.PrefetchScalarGridSpec(
            num_scalar_prefetch=0,
            grid=(num_rows, num_k),
            in_specs=in_specs,
            out_specs=out_spec,
            scratch_shapes=[pltpu.VMEM((tm, dim_p), jnp.float32)],
        ),
        compiler_params=pltpu.CompilerParams(
            dimension_semantics=("parallel", "arbitrary"),
            vmem_limit_bytes=int(budget),
        ),
        cost_estimate=pl.CostEstimate(
            flops=flops, transcendentals=0, bytes_accessed=bytes_accessed),
    )(x_p, params.w1, params.b1, params.w2, params.b2)

    return out[:n, :dim].reshape(orig_shape)


def position_wise_ffn_pallas(x, w1, b1, w2, b2, *, tm=None, tk=None,
                             compute_dtype=None):
    """Linear(dim, hidden) -> ReLU -> Linear(hidden, dim), position-wise.

    compute_dtype=None defaults to bfloat16 for f32 inputs (MXU-native,
    halves weight HBM bytes) while keeping f32 accumulation / bias / ReLU;
    pass jnp.float32 for exact f32 semantics.  For repeated calls prefer
    prepare_ffn_params(...) once + _ffn_apply(x, params).
    """
    if compute_dtype is None:
        compute_dtype = jnp.bfloat16 if x.dtype == jnp.float32 else x.dtype
    params = prepare_ffn_params(w1, b1, w2, b2, compute_dtype=compute_dtype)
    return _ffn_apply(x, params, tm=tm, tk=tk)


# --------------------------------------------------------------------------- #
# Test harness
# --------------------------------------------------------------------------- #
def _init_params(key, dim, hidden, dtype=jnp.float32):
    """Deterministic init mimicking torch.nn.Linear default (+/- 1/sqrt(fan_in))."""
    k1, k2, k3, k4 = jax.random.split(key, 4)
    bound1 = 1.0 / (dim ** 0.5)
    bound2 = 1.0 / (hidden ** 0.5)
    # weights stored already transposed to (in, out) for x @ W
    w1 = jax.random.uniform(k1, (dim, hidden), dtype, -bound1, bound1)
    b1 = jax.random.uniform(k2, (hidden,), dtype, -bound1, bound1)
    w2 = jax.random.uniform(k3, (hidden, dim), dtype, -bound2, bound2)
    b2 = jax.random.uniform(k4, (dim,), dtype, -bound2, bound2)
    return w1, b1, w2, b2


if __name__ == "__main__":
    key = jax.random.PRNGKey(0)
    batch, seq, dim, hidden = 2, 8, 32, 64

    kx, kp = jax.random.split(key)
    x = jax.random.normal(kx, (batch, seq, dim), jnp.float32)
    w1, b1, w2, b2 = _init_params(kp, dim, hidden)
    ref = jnp.maximum(x @ w1 + b1, 0.0) @ w2 + b2

    # 1) exact f32 compute path
    out = jax.block_until_ready(
        position_wise_ffn_pallas(x, w1, b1, w2, b2, compute_dtype=jnp.float32))
    assert out.shape == x.shape
    assert jnp.allclose(out, ref, atol=1e-5, rtol=1e-5), "mismatch (f32)"

    # 2) ragged row count via the pre-padded params hot path
    params32 = prepare_ffn_params(w1, b1, w2, b2, compute_dtype=jnp.float32)
    x2 = jax.random.normal(kx, (3, 5, dim), jnp.float32)
    out2 = jax.block_until_ready(_ffn_apply(x2, params32))
    ref2 = jnp.maximum(x2 @ w1 + b1, 0.0) @ w2 + b2
    assert jnp.allclose(out2, ref2, atol=1e-5, rtol=1e-5), "mismatch (ragged rows)"

    # 3) default bf16-compute path (intended precision tradeoff -> looser tol)
    out3 = jax.block_until_ready(position_wise_ffn_pallas(x, w1, b1, w2, b2))
    assert jnp.allclose(out3, ref, atol=5e-2, rtol=5e-2), "mismatch (bf16 compute)"

    # 4) K-tiled (num_k > 1) + serpentine weight-slab streaming path
    hidden2 = 384
    w1b, b1b, w2b, b2b = _init_params(kp, dim, hidden2)
    out4 = jax.block_until_ready(
        position_wise_ffn_pallas(x, w1b, b1b, w2b, b2b,
                                 compute_dtype=jnp.float32, tk=128))
    ref4 = jnp.maximum(x @ w1b + b1b, 0.0) @ w2b + b2b
    assert jnp.allclose(out4, ref4, atol=1e-4, rtol=1e-4), "mismatch (K-tiled)"

    print("KERNEL_OK")
</pallas_src>

<mosaic_0001>
module attributes {stable_mosaic.version = 11 : i64} {
  func.func @_ffn_kernel(%arg0: i32, %arg1: i32, %arg2: memref<8x128xf32, #tpu.memory_space<vmem>>, %arg3: memref<128x128xf32, #tpu.memory_space<vmem>>, %arg4: memref<1x128xf32, #tpu.memory_space<vmem>>, %arg5: memref<128x128xf32, #tpu.memory_space<vmem>>, %arg6: memref<1x128xf32, #tpu.memory_space<vmem>>, %arg7: memref<8x128xf32, #tpu.memory_space<vmem>>, %arg8: memref<8x128xf32, #tpu.memory_space<vmem>>) attributes {dimension_semantics = [#tpu.dimension_semantics<parallel>, #tpu.dimension_semantics<arbitrary>], iteration_bounds = array<i64: 2, 1>, scalar_prefetch = 0 : i64, scratch_operands = 1 : i64, tpu.core_type = #tpu.core_type<tc>, window_params = [{transform_indices = @transform_0, window_bounds = array<i64: 8, 128>}, {pipeline_mode = #tpu.pipeline_mode<synchronous>, transform_indices = @transform_1, window_bounds = array<i64: 128, 128>}, {pipeline_mode = #tpu.pipeline_mode<synchronous>, transform_indices = @transform_2, window_bounds = array<i64: 1, 128>}, {pipeline_mode = #tpu.pipeline_mode<synchronous>, transform_indices = @transform_3, window_bounds = array<i64: 128, 128>}, {pipeline_mode = #tpu.pipeline_mode<synchronous>, transform_indices = @transform_4, window_bounds = array<i64: 1, 128>}, {transform_indices = @transform_5, window_bounds = array<i64: 8, 128>}]} {
    %c0_i32 = arith.constant 0 : i32
    %0 = arith.cmpi eq, %arg1, %c0_i32 : i32
    %1 = arith.extui %0 : i1 to i32
    %c0_i32_0 = arith.constant 0 : i32
    %2 = arith.cmpi ne, %1, %c0_i32_0 : i32
    scf.if %2 {
      %cst_16 = arith.constant 0.000000e+00 : f32
      %19 = vector.broadcast %cst_16 : f32 to vector<8x128xf32>
      %c0_17 = arith.constant 0 : index
      %c0_18 = arith.constant 0 : index
      %20 = vector.load %arg8[%c0_17, %c0_18] : memref<8x128xf32, #tpu.memory_space<vmem>>, vector<8x128xf32>
      tpu.vector_store %arg8[%c0_17, %c0_18], %19 {strides = array<i32>} : memref<8x128xf32, #tpu.memory_space<vmem>>, vector<8x128xf32>,
    } else {
    }
    %c0 = arith.constant 0 : index
    %c0_1 = arith.constant 0 : index
    %3 = vector.load %arg2[%c0, %c0_1] : memref<8x128xf32, #tpu.memory_space<vmem>>, vector<8x128xf32>
    %c0_2 = arith.constant 0 : index
    %c0_3 = arith.constant 0 : index
    %4 = vector.load %arg3[%c0_2, %c0_3] : memref<128x128xf32, #tpu.memory_space<vmem>>, vector<128x128xf32>
    %cst = arith.constant dense<0.000000e+00> : vector<8x128xf32>
    %5 = tpu.matmul %3, %4, %cst {dimension_numbers = #tpu.dot_dimension_numbers<[1], [0], [0], [1], [0, 0, 1, 1], [], []>} : vector<8x128xf32>, vector<128x128xf32>, vector<8x128xf32> -> vector<8x128xf32>
    %c0_4 = arith.constant 0 : index
    %c0_5 = arith.constant 0 : index
    %6 = vector.load %arg4[%c0_4, %c0_5] : memref<1x128xf32, #tpu.memory_space<vmem>>, vector<1x128xf32>
    %7 = vector.broadcast %6 : vector<1x128xf32> to vector<8x128xf32>
    %8 = arith.addf %5, %7 : vector<8x128xf32>
    %cst_6 = arith.constant 0.000000e+00 : f32
    %9 = vector.broadcast %cst_6 : f32 to vector<8x128xf32>
    %10 = arith.maximumf %8, %9 : vector<8x128xf32>
    %c0_7 = arith.constant 0 : index
    %c0_8 = arith.constant 0 : index
    %11 = vector.load %arg8[%c0_7, %c0_8] : memref<8x128xf32, #tpu.memory_space<vmem>>, vector<8x128xf32>
    %c0_9 = arith.constant 0 : index
    %c0_10 = arith.constant 0 : index
    %12 = vector.load %arg5[%c0_9, %c0_10] : memref<128x128xf32, #tpu.memory_space<vmem>>, vector<128x128xf32>
    %cst_11 = arith.constant dense<0.000000e+00> : vector<8x128xf32>
    %13 = tpu.matmul %10, %12, %cst_11 {dimension_numbers = #tpu.dot_dimension_numbers<[1], [0], [0], [1], [0, 0, 1, 1], [], []>} : vector<8x128xf32>, vector<128x128xf32>, vector<8x128xf32> -> vector<8x128xf32>
    %14 = arith.addf %11, %13 : vector<8x128xf32>
    %c0_12 = arith.constant 0 : index
    %c0_13 = arith.constant 0 : index
    %15 = vector.load %arg8[%c0_12, %c0_13] : memref<8x128xf32, #tpu.memory_space<vmem>>, vector<8x128xf32>
    tpu.vector_store %arg8[%c0_12, %c0_13], %14 {strides = array<i32>} : memref<8x128xf32, #tpu.memory_space<vmem>>, vector<8x128xf32>,
    %c0_i32_14 = arith.constant 0 : i32
    %16 = arith.cmpi eq, %arg1, %c0_i32_14 : i32
    %17 = arith.extui %16 : i1 to i32
    %c0_i32_15 = arith.constant 0 : i32
    %18 = arith.cmpi ne, %17, %c0_i32_15 : i32
    scf.if %18 {
      %c0_16 = arith.constant 0 : index
      %c0_17 = arith.constant 0 : index
      %19 = vector.load %arg8[%c0_16, %c0_17] : memref<8x128xf32, #tpu.memory_space<vmem>>, vector<8x128xf32>
      %c0_18 = arith.constant 0 : index
      %c0_19 = arith.constant 0 : index
      %20 = vector.load %arg6[%c0_18, %c0_19] : memref<1x128xf32, #tpu.memory_space<vmem>>, vector<1x128xf32>
      %21 = vector.broadcast %20 : vector<1x128xf32> to vector<8x128xf32>
      %22 = arith.addf %19, %21 : vector<8x128xf32>
      %c0_20 = arith.constant 0 : index
      %c0_21 = arith.constant 0 : index
      %23 = vector.load %arg7[%c0_20, %c0_21] : memref<8x128xf32, #tpu.memory_space<vmem>>, vector<8x128xf32>
      tpu.vector_store %arg7[%c0_20, %c0_21], %22 {strides = array<i32>} : memref<8x128xf32, #tpu.memory_space<vmem>>, vector<8x128xf32>,
    } else {
    }
    return
  }
  func.func @transform_0(%arg0: i32, %arg1: i32) -> (i32, i32) {
    %c0_i32 = arith.constant 0 : i32
    %c0_i32_0 = arith.constant 0 : i32
    return %arg0, %c0_i32 : i32, i32
  }
  func.func @transform_1(%arg0: i32, %arg1: i32) -> (i32, i32) {
    %c0_i32 = arith.constant 0 : i32
    %c0_i32_0 = arith.constant 0 : i32
    %c0_i32_1 = arith.constant 0 : i32
    return %c0_i32, %c0_i32_0 : i32, i32
  }
  func.func @transform_2(%arg0: i32, %arg1: i32) -> (i32, i32) {
    %c0_i32 = arith.constant 0 : i32
    %c0_i32_0 = arith.constant 0 : i32
    %c0_i32_1 = arith.constant 0 : i32
    return %c0_i32, %c0_i32_0 : i32, i32
  }
  func.func @transform_3(%arg0: i32, %arg1: i32) -> (i32, i32) {
    %c0_i32 = arith.constant 0 : i32
    %c0_i32_0 = arith.constant 0 : i32
    %c0_i32_1 = arith.constant 0 : i32
    return %c0_i32, %c0_i32_0 : i32, i32
  }
  func.func @transform_4(%arg0: i32, %arg1: i32) -> (i32, i32) {
    %c0_i32 = arith.constant 0 : i32
    %c0_i32_0 = arith.constant 0 : i32
    %c0_i32_1 = arith.constant 0 : i32
    return %c0_i32, %c0_i32_0 : i32, i32
  }
  func.func @transform_5(%arg0: i32, %arg1: i32) -> (i32, i32) {
    %c0_i32 = arith.constant 0 : i32
    %c0_i32_0 = arith.constant 0 : i32
    return %arg0, %c0_i32 : i32, i32
  }
}

</mosaic_0001>

<llo_original>
// kernel: tpu_custom_call.1
$region0: #{tpu_custom_call.1}
  #allocation0 [shape = 'u32[]', space=smem, size = 0x4, offset = 0x4, fixed_abs, tag = 'smem constant byte address 0x4 - core index']
  #allocation1 [shape = 'u32[144,128]{1,0:T(1,128)}', space=vmem, size = 0x12000, scoped, tag = 'internal scratch']
  #allocation2 [shape = 'f32[8,128]{1,0:T(8,128)}', space=vmem, size = 0x1000, scoped, tag = 'scratch operand']
  %s0 = inlined_call_operand.hbm [shape: f32[16,128], index: 0, kind: input, shape index: {}]
  %s1 = inlined_call_operand.hbm [shape: f32[128,128], index: 1, kind: input, shape index: {}]
  %s2 = inlined_call_operand.vmem [shape: f32[1,128], index: 2, kind: input, shape index: {}]
  %s3 = inlined_call_operand.hbm [shape: f32[128,128], index: 3, kind: input, shape index: {}]
  %s4 = inlined_call_operand.vmem [shape: f32[1,128], index: 4, kind: input, shape index: {}]
  %s5 = inlined_call_operand.hbm [shape: f32[16,128], index: 5, kind: output, shape index: {}]
  %s6 = sld [smem:[#allocation0]]
  $region73: #{tpu_custom_call.1} parent=0
    _
  %s8 = ssub.s32 1, %s6
  %s9 = scalar_select 0, %s8, %s6
  $region1: #{tpu_custom_call.1} parent=0
    #allocation3 [shape = 'u8[8192]{0}', space=vmem, size = 0x2000, scoped, tag = 'input window, operand 0']
    #allocation4 [shape = 's32[2]{0}', space=sflag, size = 0x8, scoped, tag = 'scoped memory for tpu_custom_call.1']
    #allocation5 [shape = 's32[2]{0}', space=sflag, size = 0x8, scoped, tag = 'scoped memory for tpu_custom_call.1']
    #allocation6 [shape = 'u8[65536]{0}', space=vmem, size = 0x10000, scoped, tag = 'input window, operand 1, single buffered']
    #allocation7 [shape = 's32[1]{0}', space=sflag, size = 0x4, scoped, tag = 'scoped memory for tpu_custom_call.1']
    #allocation8 [shape = 'u8[65536]{0}', space=vmem, size = 0x10000, scoped, tag = 'input window, operand 3, single buffered']
    #allocation9 [shape = 'u8[8192]{0}', space=vmem, size = 0x2000, scoped, tag = 'output window, operand 0']
    %10 = vsyncpa [#allocation4], 0
    %s11 = scalar_lea.sflag [#allocation4], 1
    %12 = vsyncpa %s11, 0
    %13 = vsyncpa [#allocation7], 0
    %14 = vsyncpa [#allocation5], 0
    %s15 = scalar_lea.sflag [#allocation5], 1
    %16 = vsyncpa %s15, 0
    loop: start=0, step=1, limit=4
    $region2: #{tpu_custom_call.1} parent=1 // loop_pre_header
      _
    $region3: #{tpu_custom_call.1} parent=1 // loop_header
      %s18 = sphi 0, %s22
      %p19 = scmp.ge.s32.totalorder %s18, 4
      %s25 = sphi 0, %s37
      %s26 = sphi 0, %s33
      %s27 = sphi 0, %s25
      %s28 = sphi 0, %s26
      %s29 = sphi 0, %s27
      %s30 = sphi 0, %s28
      %s40 = sphi 0, %s42
      %s43 = sphi 0, %s40
      %s44 = sphi 0, %s43
      %s60 = sphi 0, %s44
      %s64 = sphi 0, %s64
      %s66 = sphi 0, %s64
      %s67 = sphi 0, %s66
      %s81 = sphi 0, %s67
      %s85 = sphi 0, %s85
      %s87 = sphi 0, %s85
      %s88 = sphi 0, %s87
      %s102 = sphi 0, %s88
      %s106 = sphi 0, %s106
      %s108 = sphi 0, %s106
      %s109 = sphi 0, %s108
      %s123 = sphi 0, %s109
      %s127 = sphi 0, %s127
      %s129 = sphi 0, %s127
      %s130 = sphi 0, %s129
      %s144 = sphi 0, %s130
      %s150 = sphi 0, %s152
      %s153 = sphi 0, %s150
      %s154 = sphi 0, %s153
      %s170 = sphi 0, %s154
    $region4: #{tpu_custom_call.1} parent=1 // loop_header_branch
      %21 = sbr.rel (%p19) target = $region8
    $region5: #{tpu_custom_call.1} parent=1 // loop_body
      %s23 = ssub.s32 %s18, 1
      %s24 = ssub.s32 %s18, 2
      %s31 = sadd.s32 1, %s26
      %p32 = scmp.ge.s32.totalorder %s31, 1
      %s33 = scalar_select %p32, 0, %s31
      %s34 = sadd.s32 1, %s25
      %s35 = scalar_select %p32, %s34, %s25
      %p36 = scmp.ge.s32.totalorder %s35, 2
      %s37 = scalar_select %p36, 0, %s35
      %s38 = ssub.s32 %s25, %s37
      %p39 = scmp.eq.s32.totalorder %s38, 0
      %s41 = sadd.s32 %s40, 1
      %s42 = scalar_select %p39, %s40, %s41
      %p45 = pneg %p39
      %p46 = scmp.eq.s32.totalorder %s18, 1
      %p47 = por %p45, %p46
      %p48 = scmp.ne.s32.totalorder %s40, %s43
      %p49 = scmp.eq.s32.totalorder %s18, 0
      %p50 = por %p48, %p49
      %p51 = scmp.ne.s32.totalorder %s40, %s43
      %p52 = scmp.eq.s32.totalorder %s23, 1
      %p53 = por %p51, %p52
      %p54 = scmp.ne.s32.totalorder %s43, %s44
      %p55 = scmp.eq.s32.totalorder %s23, 0
      %p56 = por %p54, %p55
      %p57 = scmp.ne.s32.totalorder %s43, %s44
      %p58 = scmp.eq.s32.totalorder %s24, 1
      %p59 = por %p57, %p58
      %p61 = scmp.ne.s32.totalorder %s44, %s60
      %p62 = scmp.eq.s32.totalorder %s24, 0
      %p63 = por %p61, %p62
      %s65 = sadd.s32 %s64, 1
      %p68 = scmp.eq.s32.totalorder %s18, 1
      %p69 = scmp.ne.s32.totalorder %s64, %s66
      %p70 = scmp.eq.s32.totalorder %s18, 0
      %p71 = por %p69, %p70
      %p72 = scmp.ne.s32.totalorder %s64, %s66
      %p73 = scmp.eq.s32.totalorder %s23, 1
      %p74 = por %p72, %p73
      %p75 = scmp.ne.s32.totalorder %s66, %s67
      %p76 = scmp.eq.s32.totalorder %s23, 0
      %p77 = por %p75, %p76
      %p78 = scmp.ne.s32.totalorder %s66, %s67
      %p79 = scmp.eq.s32.totalorder %s24, 1
      %p80 = por %p78, %p79
      %p82 = scmp.ne.s32.totalorder %s67, %s81
      %p83 = scmp.eq.s32.totalorder %s24, 0
      %p84 = por %p82, %p83
      %s86 = sadd.s32 %s85, 1
      %p89 = scmp.eq.s32.totalorder %s18, 1
      %p90 = scmp.ne.s32.totalorder %s85, %s87
      %p91 = scmp.eq.s32.totalorder %s18, 0
      %p92 = por %p90, %p91
      %p93 = scmp.ne.s32.totalorder %s85, %s87
      %p94 = scmp.eq.s32.totalorder %s23, 1
      %p95 = por %p93, %p94
      %p96 = scmp.ne.s32.totalorder %s87, %s88
      %p97 = scmp.eq.s32.totalorder %s23, 0
      %p98 = por %p96, %p97
      %p99 = scmp.ne.s32.totalorder %s87, %s88
      %p100 = scmp.eq.s32.totalorder %s24, 1
      %p101 = por %p99, %p100
      %p103 = scmp.ne.s32.totalorder %s88, %s102
      %p104 = scmp.eq.s32.totalorder %s24, 0
      %p105 = por %p103, %p104
      %s107 = sadd.s32 %s106, 1
      %p110 = scmp.eq.s32.totalorder %s18, 1
      %p111 = scmp.ne.s32.totalorder %s106, %s108
      %p112 = scmp.eq.s32.totalorder %s18, 0
      %p113 = por %p111, %p112
      %p114 = scmp.ne.s32.totalorder %s106, %s108
      %p115 = scmp.eq.s32.totalorder %s23, 1
      %p116 = por %p114, %p115
      %p117 = scmp.ne.s32.totalorder %s108, %s109
      %p118 = scmp.eq.s32.totalorder %s23, 0
      %p119 = por %p117, %p118
      %p120 = scmp.ne.s32.totalorder %s108, %s109
      %p121 = scmp.eq.s32.totalorder %s24, 1
      %p122 = por %p120, %p121
      %p124 = scmp.ne.s32.totalorder %s109, %s123
      %p125 = scmp.eq.s32.totalorder %s24, 0
      %p126 = por %p124, %p125
      %s128 = sadd.s32 %s127, 1
      %p131 = scmp.eq.s32.totalorder %s18, 1
      %p132 = scmp.ne.s32.totalorder %s127, %s129
      %p133 = scmp.eq.s32.totalorder %s18, 0
      %p134 = por %p132, %p133
      %p135 = scmp.ne.s32.totalorder %s127, %s129
      %p136 = scmp.eq.s32.totalorder %s23, 1
      %p137 = por %p135, %p136
      %p138 = scmp.ne.s32.totalorder %s129, %s130
      %p139 = scmp.eq.s32.totalorder %s23, 0
      %p140 = por %p138, %p139
      %p141 = scmp.ne.s32.totalorder %s129, %s130
      %p142 = scmp.eq.s32.totalorder %s24, 1
      %p143 = por %p141, %p142
      %p145 = scmp.ne.s32.totalorder %s130, %s144
      %p146 = scmp.eq.s32.totalorder %s24, 0
      %p147 = por %p145, %p146
      %s148 = ssub.s32 %s25, %s37
      %p149 = scmp.eq.s32.totalorder %s148, 0
      %s151 = sadd.s32 %s150, 1
      %s152 = scalar_select %p149, %s150, %s151
      %p155 = pneg %p149
      %p156 = scmp.eq.s32.totalorder %s18, 1
      %p157 = por %p155, %p156
      %p158 = scmp.ne.s32.totalorder %s150, %s153
      %p159 = scmp.eq.s32.totalorder %s18, 0
      %p160 = por %p158, %p159
      %p161 = scmp.ne.s32.totalorder %s150, %s153
      %p162 = scmp.eq.s32.totalorder %s23, 1
      %p163 = por %p161, %p162
      %p164 = scmp.ne.s32.totalorder %s153, %s154
      %p165 = scmp.eq.s32.totalorder %s23, 0
      %p166 = por %p164, %p165
      %p167 = scmp.ne.s32.totalorder %s153, %s154
      %p168 = scmp.eq.s32.totalorder %s24, 1
      %p169 = por %p167, %p168
      %p171 = scmp.ne.s32.totalorder %s154, %s170
      %p172 = scmp.eq.s32.totalorder %s24, 0
      %p173 = por %p171, %p172
      %p174 = scmp.le.s32.totalorder 1, %s18
      %p175 = scmp.lt.s32.totalorder %s18, 3
      %p176 = pnand %p174, %p175
      %p177 = pneg %p176
      // Predicated region
      $region9: #{tpu_custom_call.1} parent=5 // pred_check
        _
      $region10: #{tpu_custom_call.1} parent=5 // pred_check_branch
        %179 = sbr.rel (%p176) target = $region12
      $region11: #{tpu_custom_call.1} parent=5 // pred_region
        %s180 = ssub.s32 %s18, 1
        // Predicated region
        $region13: #{tpu_custom_call.1} parent=11 // pred_check
          %p181 = pneg %p77
        $region14: #{tpu_custom_call.1} parent=11 // pred_check_branch
          %183 = sbr.rel (%p181) target = $region16
        $region15: #{tpu_custom_call.1} parent=11 // pred_region
          %s185 = ssub.s32 2048, 2048
          %186 = vsyncadd [#allocation7], %s185
          %s187 = sshll.u32 [#allocation6], 4
          %s188 = int_to_ptr.vmem [resolvable:$true] %s187
          %193 = dma.hbm_to_vmem [thread:$0]  %s1, 2048, %s188, [#allocation7], 128, 128, 8
        $region16: #{tpu_custom_call.1} parent=11 // pred_fallthru
          _
        // Predicated region
        $region17: #{tpu_custom_call.1} parent=11 // pred_check
          %p194 = pneg %p98
        $region18: #{tpu_custom_call.1} parent=11 // pred_check_branch
          %196 = sbr.rel (%p194) target = $region20
        $region19: #{tpu_custom_call.1} parent=11 // pred_region
          _
        $region20: #{tpu_custom_call.1} parent=11 // pred_fallthru
          _
        // Predicated region
        $region21: #{tpu_custom_call.1} parent=11 // pred_check
          %p197 = pneg %p119
        $region22: #{tpu_custom_call.1} parent=11 // pred_check_branch
          %199 = sbr.rel (%p197) target = $region24
        $region23: #{tpu_custom_call.1} parent=11 // pred_region
          %s201 = ssub.s32 2048, 2048
          %202 = vsyncadd [#allocation7], %s201
          %s203 = sshll.u32 [#allocation8], 4
          %s204 = int_to_ptr.vmem [resolvable:$true] %s203
          %209 = dma.hbm_to_vmem [thread:$0]  %s3, 2048, %s204, [#allocation7], 128, 128, 8
        $region24: #{tpu_custom_call.1} parent=11 // pred_fallthru
          _
        // Predicated region
        $region25: #{tpu_custom_call.1} parent=11 // pred_check
          %p210 = pneg %p140
        $region26: #{tpu_custom_call.1} parent=11 // pred_check_branch
          %212 = sbr.rel (%p210) target = $region28
        $region27: #{tpu_custom_call.1} parent=11 // pred_region
          _
        $region28: #{tpu_custom_call.1} parent=11 // pred_fallthru
          _
      $region12: #{tpu_custom_call.1} parent=5 // pred_fallthru
        _
      %p213 = scmp.lt.s32.totalorder %s18, 2
      // Predicated region
      $region29: #{tpu_custom_call.1} parent=5 // pred_check
        %p214 = pneg %p213
      $region30: #{tpu_custom_call.1} parent=5 // pred_check_branch
        %216 = sbr.rel (%p214) target = $region32
      $region31: #{tpu_custom_call.1} parent=5 // pred_region
        // Predicated region
        $region33: #{tpu_custom_call.1} parent=31 // pred_check
          %p217 = pneg %p50
        $region34: #{tpu_custom_call.1} parent=31 // pred_check_branch
          %219 = sbr.rel (%p217) target = $region36
        $region35: #{tpu_custom_call.1} parent=31 // pred_region
          %s220 = sand.u32 %s40, 1
          %s221 = scalar_lea.sflag [#allocation4], %s220
          %s222 = sand.u32 %s40, 1
          %s223 = smul.addr %s222, 8
          %s224 = scalar_lea.vmem [#allocation3], %s223
          %s226 = ssub.s32 128, 128
          %227 = vsyncadd %s221, %s226
          %s228 = smul.addr %s25, 128
          %s229 = scalar_lea.hbm %s0, %s228
          %s231 = sshll.u32 %s224, 4
          %s232 = int_to_ptr.vmem [resolvable:$true] %s231
          %234 = dma.hbm_to_vmem [thread:$0]  %s229, 128, %s232, %s221
        $region36: #{tpu_custom_call.1} parent=31 // pred_fallthru
          _
      $region32: #{tpu_custom_call.1} parent=5 // pred_fallthru
        _
      %p235 = scmp.le.s32.totalorder 1, %s18
      %p236 = scmp.lt.s32.totalorder %s18, 3
      %p237 = pnand %p235, %p236
      %p238 = pneg %p237
      // Predicated region
      $region37: #{tpu_custom_call.1} parent=5 // pred_check
        _
      $region38: #{tpu_custom_call.1} parent=5 // pred_check_branch
        %240 = sbr.rel (%p237) target = $region40
      $region39: #{tpu_custom_call.1} parent=5 // pred_region
        %s241 = ssub.s32 %s18, 1
        %s242 = sand.u32 %s43, 1
        %s243 = scalar_lea.sflag [#allocation4], %s242
        %s244 = sand.u32 %s43, 1
        %s245 = smul.addr %s244, 8
        %s246 = scalar_lea.vmem [#allocation3], %s245
        // Predicated region
        $region41: #{tpu_custom_call.1} parent=39 // pred_check
          %p247 = pneg %p56
        $region42: #{tpu_custom_call.1} parent=39 // pred_check_branch
          %249 = sbr.rel (%p247) target = $region44
        $region43: #{tpu_custom_call.1} parent=39 // pred_region
          %250 = dma.done %s243, 128
        $region44: #{tpu_custom_call.1} parent=39 // pred_fallthru
          _
        // Predicated region
        $region45: #{tpu_custom_call.1} parent=39 // pred_check
          %p251 = pneg %p77
        $region46: #{tpu_custom_call.1} parent=39 // pred_check_branch
          %253 = sbr.rel (%p251) target = $region48
        $region47: #{tpu_custom_call.1} parent=39 // pred_region
          %254 = dma.done [#allocation7], 2048
        $region48: #{tpu_custom_call.1} parent=39 // pred_fallthru
          _
        // Predicated region
        $region49: #{tpu_custom_call.1} parent=39 // pred_check
          %p255 = pneg %p119
        $region50: #{tpu_custom_call.1} parent=39 // pred_check_branch
          %257 = sbr.rel (%p255) target = $region52
        $region51: #{tpu_custom_call.1} parent=39 // pred_region
          %258 = dma.done [#allocation7], 2048
        $region52: #{tpu_custom_call.1} parent=39 // pred_fallthru
          _
        %s259 = sand.u32 %s43, 1
        %s260 = scalar_lea.sflag [#allocation4], %s259
        %s261 = sand.u32 %s43, 1
        %s262 = smul.addr %s261, 8
        %s263 = scalar_lea.vmem [#allocation3], %s262
        %p264 = pneg %p56
        %p265 = pneg %p53
        %p266 = pneg %p77
        %p267 = pneg %p74
        %p268 = pneg %p98
        %p269 = pneg %p95
        %p270 = pneg %p119
        %p271 = pneg %p116
        %p272 = pneg %p140
        %p273 = pneg %p137
        %p274 = pneg %p166
        %p275 = pneg %p163
        %s276 = sand.u32 %s153, 1
        %s277 = scalar_lea.sflag [#allocation5], %s276
        %s278 = sand.u32 %s153, 1
        %s279 = smul.addr %s278, 8
        %s280 = scalar_lea.vmem [#allocation9], %s279
        %p281 = scmp.eq.s32.totalorder %s28, 0
        // Predicated region
        $region53: #{tpu_custom_call.1} parent=39 // pred_check
          %p282 = pneg %p281
        $region54: #{tpu_custom_call.1} parent=39 // pred_check_branch
          %284 = sbr.rel (%p282) target = $region56
        $region55: #{tpu_custom_call.1} parent=39 // pred_region
          %285 = vst [vmem:[#allocation2] sm:$0xff] 0.0
        $region56: #{tpu_custom_call.1} parent=39 // pred_fallthru
          _
        %v286 = vld [vmem:[%s246] sm:$0xff]
        %v287 = vld [vmem:[#allocation6] sm:$0xff]
        %v288 = vld [vmem:[#allocation6 + $0x8] sm:$0xff]
        %v289 = vld [vmem:[#allocation6 + $0x10] sm:$0xff]
        %v290 = vld [vmem:[#allocation6 + $0x18] sm:$0xff]
        %v291 = vld [vmem:[#allocation6 + $0x20] sm:$0xff]
        %v292 = vld [vmem:[#allocation6 + $0x28] sm:$0xff]
        %v293 = vld [vmem:[#allocation6 + $0x30] sm:$0xff]
        %v294 = vld [vmem:[#allocation6 + $0x38] sm:$0xff]
        %v295 = vld [vmem:[#allocation6 + $0x40] sm:$0xff]
        %v296 = vld [vmem:[#allocation6 + $0x48] sm:$0xff]
        %v297 = vld [vmem:[#allocation6 + $0x50] sm:$0xff]
        %v298 = vld [vmem:[#allocation6 + $0x58] sm:$0xff]
        %v299 = vld [vmem:[#allocation6 + $0x60] sm:$0xff]
        %v300 = vld [vmem:[#allocation6 + $0x68] sm:$0xff]
        %v301 = vld [vmem:[#allocation6 + $0x70] sm:$0xff]
        %v302 = vld [vmem:[#allocation6 + $0x78] sm:$0xff]
        %v303 = vld [vmem:[%s2] sm:$0x1]
        %v305 = vlaneseq
        %v306 = vshrl.u32 %v305, 7
        %v307 = vsub.s32 0, %v306
        %v308 = vrot.slane %v303, %v307
        %310 = vmatprep.subr.mxu0 0.0
        %311 = vmatpush1.msra.mxu0 %v287
        %312 = vmatprep.subr.mxu0 0.0
        %313 = vmatpush1.msra.mxu0 %v288
        %314 = vmatprep.subr.mxu0 0.0
        %315 = vmatpush1.msra.mxu0 %v289
        %316 = vmatprep.subr.mxu0 0.0
        %317 = vmatpush1.msra.mxu0 %v290
        %318 = vmatprep.subr.mxu0 0.0
        %319 = vmatpush1.msra.mxu0 %v291
        %320 = vmatprep.subr.mxu0 0.0
        %321 = vmatpush1.msra.mxu0 %v292
        %322 = vmatprep.subr.mxu0 0.0
        %323 = vmatpush1.msra.mxu0 %v293
        %324 = vmatprep.subr.mxu0 0.0
        %325 = vmatpush1.msra.mxu0 %v294
        %326 = vmatprep.subr.mxu0 0.0
        %327 = vmatpush1.msra.mxu0 %v295
        %328 = vmatprep.subr.mxu0 0.0
        %329 = vmatpush1.msra.mxu0 %v296
        %330 = vmatprep.subr.mxu0 0.0
        %331 = vmatpush1.msra.mxu0 %v297
        %332 = vmatprep.subr.mxu0 0.0
        %333 = vmatpush1.msra.mxu0 %v298
        %334 = vmatprep.subr.mxu0 0.0
        %335 = vmatpush1.msra.mxu0 %v299
        %336 = vmatprep.subr.mxu0 0.0
        %337 = vmatpush1.msra.mxu0 %v300
        %338 = vmatprep.subr.mxu0 0.0
        %339 = vmatpush1.msra.mxu0 %v301
        %340 = vmatprep.subr.mxu0 0.0
        %341 = vmatpush1.msra.mxu0 %v302
        %342 = vmatprep.subr.mxu0 0.0
        %343 = vmatpush1.msra.mxu0 0.0
        %344 = vmatprep.subr.mxu0 0.0
        %345 = vmatpush1.msra.mxu0 0.0
        %346 = vmatprep.subr.mxu0 0.0
        %347 = vmatpush1.msra.mxu0 0.0
        %348 = vmatprep.subr.mxu0 0.0
        %349 = vmatpush1.msra.mxu0 0.0
        %350 = vmatprep.subr.mxu0 0.0
        %351 = vmatpush1.msra.mxu0 0.0
        %352 = vmatprep.subr.mxu0 0.0
        %353 = vmatpush1.msra.mxu0 0.0
        %354 = vmatprep.subr.mxu0 0.0
        %355 = vmatpush1.msra.mxu0 0.0
        %356 = vmatprep.subr.mxu0 0.0
        %357 = vmatpush1.msra.mxu0 0.0
        %358 = vmatprep.subr.mxu0 0.0
        %359 = vmatpush1.msra.mxu0 0.0
        %360 = vmatprep.subr.mxu0 0.0
        %361 = vmatpush1.msra.mxu0 0.0
        %362 = vmatprep.subr.mxu0 0.0
        %363 = vmatpush1.msra.mxu0 0.0
        %364 = vmatprep.subr.mxu0 0.0
        %365 = vmatpush1.msra.mxu0 0.0
        %366 = vmatprep.subr.mxu0 0.0
        %367 = vmatpush1.msra.mxu0 0.0
        %368 = vmatprep.subr.mxu0 0.0
        %369 = vmatpush1.msra.mxu0 0.0
        %370 = vmatprep.subr.mxu0 0.0
        %371 = vmatpush1.msra.mxu0 0.0
        %372 = vmatprep.subr.mxu0 0.0
        %373 = vmatpush1.msra.mxu0 0.0
        %374 = vmatprep.mubr.f32.mxu0 0.0
        %375 = vmatmul.mubr.f32.gmra.mrb[0].mxu0 %v286
        %v376 = vpop.f32.mrb[0].mxu0
        %v377 = vadd.f32 %v308, %v376
        %v378 = vpop.f32.mrb[0].mxu0
        %379 = vdwg.mxu0
        %v380 = vmax.f32 %v377, 0.0
        %v381 = vld [vmem:[#allocation2] sm:$0xff]
        %v382 = vld [vmem:[#allocation8] sm:$0xff]
        %v383 = vld [vmem:[#allocation8 + $0x8] sm:$0xff]
        %v384 = vld [vmem:[#allocation8 + $0x10] sm:$0xff]
        %v385 = vld [vmem:[#allocation8 + $0x18] sm:$0xff]
        %v386 = vld [vmem:[#allocation8 + $0x20] sm:$0xff]
        %v387 = vld [vmem:[#allocation8 + $0x28] sm:$0xff]
        %v388 = vld [vmem:[#allocation8 + $0x30] sm:$0xff]
        %v389 = vld [vmem:[#allocation8 + $0x38] sm:$0xff]
        %v390 = vld [vmem:[#allocation8 + $0x40] sm:$0xff]
        %v391 = vld [vmem:[#allocation8 + $0x48] sm:$0xff]
        %v392 = vld [vmem:[#allocation8 + $0x50] sm:$0xff]
        %v393 = vld [vmem:[#allocation8 + $0x58] sm:$0xff]
        %v394 = vld [vmem:[#allocation8 + $0x60] sm:$0xff]
        %v395 = vld [vmem:[#allocation8 + $0x68] sm:$0xff]
        %v396 = vld [vmem:[#allocation8 + $0x70] sm:$0xff]
        %v397 = vld [vmem:[#allocation8 + $0x78] sm:$0xff]
        %398 = vmatprep.subr.mxu0 0.0
        %399 = vmatpush1.msra.mxu0 %v382
        %400 = vmatprep.subr.mxu0 0.0
        %401 = vmatpush1.msra.mxu0 %v383
        %402 = vmatprep.subr.mxu0 0.0
        %403 = vmatpush1.msra.mxu0 %v384
        %404 = vmatprep.subr.mxu0 0.0
        %405 = vmatpush1.msra.mxu0 %v385
        %406 = vmatprep.subr.mxu0 0.0
        %407 = vmatpush1.msra.mxu0 %v386
        %408 = vmatprep.subr.mxu0 0.0
        %409 = vmatpush1.msra.mxu0 %v387
        %410 = vmatprep.subr.mxu0 0.0
        %411 = vmatpush1.msra.mxu0 %v388
        %412 = vmatprep.subr.mxu0 0.0
        %413 = vmatpush1.msra.mxu0 %v389
        %414 = vmatprep.subr.mxu0 0.0
        %415 = vmatpush1.msra.mxu0 %v390
        %416 = vmatprep.subr.mxu0 0.0
        %417 = vmatpush1.msra.mxu0 %v391
        %418 = vmatprep.subr.mxu0 0.0
        %419 = vmatpush1.msra.mxu0 %v392
        %420 = vmatprep.subr.mxu0 0.0
        %421 = vmatpush1.msra.mxu0 %v393
        %422 = vmatprep.subr.mxu0 0.0
        %423 = vmatpush1.msra.mxu0 %v394
        %424 = vmatprep.subr.mxu0 0.0
        %425 = vmatpush1.msra.mxu0 %v395
        %426 = vmatprep.subr.mxu0 0.0
        %427 = vmatpush1.msra.mxu0 %v396
        %428 = vmatprep.subr.mxu0 0.0
        %429 = vmatpush1.msra.mxu0 %v397
        %430 = vmatprep.subr.mxu0 0.0
        %431 = vmatpush1.msra.mxu0 0.0
        %432 = vmatprep.subr.mxu0 0.0
        %433 = vmatpush1.msra.mxu0 0.0
        %434 = vmatprep.subr.mxu0 0.0
        %435 = vmatpush1.msra.mxu0 0.0
        %436 = vmatprep.subr.mxu0 0.0
        %437 = vmatpush1.msra.mxu0 0.0
        %438 = vmatprep.subr.mxu0 0.0
        %439 = vmatpush1.msra.mxu0 0.0
        %440 = vmatprep.subr.mxu0 0.0
        %441 = vmatpush1.msra.mxu0 0.0
        %442 = vmatprep.subr.mxu0 0.0
        %443 = vmatpush1.msra.mxu0 0.0
        %444 = vmatprep.subr.mxu0 0.0
        %445 = vmatpush1.msra.mxu0 0.0
        %446 = vmatprep.subr.mxu0 0.0
        %447 = vmatpush1.msra.mxu0 0.0
        %448 = vmatprep.subr.mxu0 0.0
        %449 = vmatpush1.msra.mxu0 0.0
        %450 = vmatprep.subr.mxu0 0.0
        %451 = vmatpush1.msra.mxu0 0.0
        %452 = vmatprep.subr.mxu0 0.0
        %453 = vmatpush1.msra.mxu0 0.0
        %454 = vmatprep.subr.mxu0 0.0
        %455 = vmatpush1.msra.mxu0 0.0
        %456 = vmatprep.subr.mxu0 0.0
        %457 = vmatpush1.msra.mxu0 0.0
        %458 = vmatprep.subr.mxu0 0.0
        %459 = vmatpush1.msra.mxu0 0.0
        %460 = vmatprep.subr.mxu0 0.0
        %461 = vmatpush1.msra.mxu0 0.0
        %462 = vmatprep.mubr.f32.mxu0 0.0
        %463 = vmatmul.mubr.f32.gmra.mrb[0].mxu0 %v380
        %v464 = vpop.f32.mrb[0].mxu0
        %v465 = vadd.f32 0.0, %v464
        %v466 = vpop.f32.mrb[0].mxu0
        %467 = vdwg.mxu0
        %v468 = vadd.f32 %v381, %v465
        %469 = vst [vmem:[#allocation2] sm:$0xff] %v468
        // Predicated region
        $region57: #{tpu_custom_call.1} parent=39 // pred_check
          %p470 = pneg %p281
        $region58: #{tpu_custom_call.1} parent=39 // pred_check_branch
          %472 = sbr.rel (%p470) target = $region60
        $region59: #{tpu_custom_call.1} parent=39 // pred_region
          %v473 = vld [vmem:[#allocation2] sm:$0xff]
          %v474 = vld [vmem:[%s4] sm:$0x1]
          %v476 = vlaneseq
          %v477 = vshrl.u32 %v476, 7
          %v478 = vsub.s32 0, %v477
          %v479 = vrot.slane %v474, %v478
          %v481 = vadd.f32 %v473, %v479
          %482 = vst [vmem:[%s280] sm:$0xff] %v481
        $region60: #{tpu_custom_call.1} parent=39 // pred_fallthru
          _
        %s483 = sand.u32 %s153, 1
        %s484 = scalar_lea.sflag [#allocation5], %s483
        %s485 = sand.u32 %s153, 1
        %s486 = smul.addr %s485, 8
        %s487 = scalar_lea.vmem [#allocation9], %s486
        // Predicated region
        $region61: #{tpu_custom_call.1} parent=39 // pred_check
          %p488 = pneg %p163
        $region62: #{tpu_custom_call.1} parent=39 // pred_check_branch
          %490 = sbr.rel (%p488) target = $region64
        $region63: #{tpu_custom_call.1} parent=39 // pred_region
          %s492 = ssub.s32 128, 128
          %493 = vsyncadd %s484, %s492
          %s494 = smul.addr %s27, 128
          %s495 = scalar_lea.hbm %s5, %s494
          %s497 = sshll.u32 %s487, 4
          %s498 = int_to_ptr.vmem [resolvable:$true] %s497
          %500 = dma.vmem_to_hbm [thread:$0]  %s498, 128, %s495, %s484
        $region64: #{tpu_custom_call.1} parent=39 // pred_fallthru
          _
      $region40: #{tpu_custom_call.1} parent=5 // pred_fallthru
        _
      %p501 = scmp.le.s32.totalorder 2, %s18
      // Predicated region
      $region65: #{tpu_custom_call.1} parent=5 // pred_check
        %p502 = pneg %p501
      $region66: #{tpu_custom_call.1} parent=5 // pred_check_branch
        %504 = sbr.rel (%p502) target = $region68
      $region67: #{tpu_custom_call.1} parent=5 // pred_region
        %s505 = ssub.s32 %s18, 2
        // Predicated region
        $region69: #{tpu_custom_call.1} parent=67 // pred_check
          %p506 = pneg %p169
        $region70: #{tpu_custom_call.1} parent=67 // pred_check_branch
          %508 = sbr.rel (%p506) target = $region72
        $region71: #{tpu_custom_call.1} parent=67 // pred_region
          %s509 = sand.u32 %s154, 1
          %s510 = scalar_lea.sflag [#allocation5], %s509
          %s511 = sand.u32 %s154, 1
          %s512 = smul.addr %s511, 8
          %s513 = scalar_lea.vmem [#allocation9], %s512
          %514 = dma.done %s510, 128
        $region72: #{tpu_custom_call.1} parent=67 // pred_fallthru
          _
      $region68: #{tpu_custom_call.1} parent=5 // pred_fallthru
        _
    $region6: #{tpu_custom_call.1} parent=1 // loop_footer
      %s22 = sadd.s32 1, %s18
    $region7: #{tpu_custom_call.1} parent=1 // loop_footer_branch
      %17 = sbr.rel target = $region3
    $region8: #{tpu_custom_call.1} parent=1 // loop_exit
      _
    %515 = vsyncpa [#allocation4], 1
    %s516 = scalar_lea.sflag [#allocation4], 1
    %517 = vsyncpa %s516, 1
    %518 = vsyncpa [#allocation7], 1
    %519 = vsyncpa [#allocation5], 1
    %s520 = scalar_lea.sflag [#allocation5], 1
    %521 = vsyncpa %s520, 1

</llo_original>
